<compile_context>
chip_gen: v5e
topology: v5e:2x2
jax: 0.10.0
libtpu: 0.0.40
codegen_flags: <defaults>
</compile_context>

<pallas_src>
import functools
import math

import jax
import jax.numpy as jnp
from jax.experimental import pallas as pl
from jax.experimental.pallas import tpu as pltpu

_LOG_MIN = math.log(1e-7)  # lower clamp in log space


def _pnorm_kernel(x_ref, o_ref, acc_ref, *, p, n_total, tile_n):
    # x_ref: (tile_n, C) block in VMEM
    # o_ref: (1, 1) f32 result in SMEM (resident across the grid)
    # acc_ref: (1,) f32 running sum in SMEM scratch
    i = pl.program_id(0)

    @pl.when(i == 0)
    def _init():
        acc_ref[0] = jnp.float32(0.0)

    x = x_ref[...].astype(jnp.float32)

    # Numerically stable log-softmax over the class (lane) axis.
    m = jnp.max(x, axis=1, keepdims=True)
    s = x - m
    log_denom = jnp.log(jnp.sum(jnp.exp(s), axis=1, keepdims=True))
    log_probs = s - log_denom                       # <= 0

    # clamp(probs, min=1e-7)  (max=1.5 is unreachable); then probs ** p,
    # fused as a single exp in log space.
    log_probs = jnp.maximum(log_probs, jnp.float32(_LOG_MIN))
    row_norm = jnp.sum(jnp.exp(p * log_probs), axis=1, keepdims=True)  # (tile_n, 1)

    # Mask rows of a ragged last block out of the reduction.
    row_ids = i * tile_n + jax.lax.broadcasted_iota(jnp.int32, (tile_n, 1), 0)
    row_norm = jnp.where(row_ids < n_total, row_norm, jnp.float32(0.0))

    acc_ref[0] += jnp.sum(row_norm)

    @pl.when(i == pl.num_programs(0) - 1)
    def _finalize():
        o_ref[0, 0] = acc_ref[0] / jnp.float32(n_total)


def _round_up(x, m):
    return ((x + m - 1) // m) * m


def _choose_tile_n(n, c, max_tile, vmem_budget_bytes=8 << 20):
    # Keep one double-buffered f32 input block within a few MiB of VMEM.
    rows_by_budget = max(8, (vmem_budget_bytes // (2 * 4 * c)) // 8 * 8)
    return max(8, min(max_tile, rows_by_budget, _round_up(n, 8)))


def pnorm(pred, p=0.3, tile_n=1024):
    """pred: (N, C) logits. Returns scalar f32 = mean_n( sum_c clamp(softmax(pred))_{nc}^p )."""
    n, c = pred.shape
    tn = _choose_tile_n(n, c, tile_n)
    grid = (pl.cdiv(n, tn),)

    out = pl.pallas_call(
        functools.partial(_pnorm_kernel, p=float(p), n_total=n, tile_n=tn),
        out_shape=jax.ShapeDtypeStruct((1, 1), jnp.float32),
        grid_spec=pltpu.PrefetchScalarGridSpec(
            num_scalar_prefetch=0,
            grid=grid,
            in_specs=[pl.BlockSpec((tn, c), lambda i: (i, 0))],
            out_specs=pl.BlockSpec((1, 1), lambda i: (0, 0),
                                   memory_space=pltpu.SMEM),
            scratch_shapes=[pltpu.SMEM((1,), jnp.float32)],
        ),
        compiler_params=pltpu.CompilerParams(
            dimension_semantics=("arbitrary",)),
    )(pred)
    return out[0, 0]


def _pnorm_ref(pred, p=0.3):
    probs = jax.nn.softmax(pred.astype(jnp.float32), axis=1)
    probs = jnp.clip(probs, 1e-7, 1.5)
    return jnp.mean(jnp.sum(probs ** p, axis=1))


if __name__ == "__main__":
    key = jax.random.PRNGKey(0)
    # small logits tensor: batch=20, classes=32 (ragged vs. an 8-row tile)
    x = jax.random.normal(key, (20, 32), dtype=jnp.float32)

    # multi-block path: 3 grid steps, last block ragged (20 = 8 + 8 + 4)
    out_tiled = jax.block_until_ready(pnorm(x, p=0.3, tile_n=8))
    # default tile (single block)
    out_single = jax.block_until_ready(pnorm(x, p=0.3))

    ref = _pnorm_ref(x, p=0.3)
    assert jnp.allclose(out_tiled, ref, rtol=1e-5, atol=1e-5), (out_tiled, ref)
    assert jnp.allclose(out_single, ref, rtol=1e-5, atol=1e-5), (out_single, ref)

    print("KERNEL_OK")
</pallas_src>

<mosaic_0001>
module attributes {stable_mosaic.version = 11 : i64} {
  func.func @_pnorm_kernel(%arg0: i32, %arg1: memref<8x32xf32, #tpu.memory_space<vmem>>, %arg2: memref<1x1xf32, #tpu.memory_space<smem>>, %arg3: memref<1xf32, #tpu.memory_space<smem>>) attributes {dimension_semantics = [#tpu.dimension_semantics<arbitrary>], iteration_bounds = array<i64: 3>, scalar_prefetch = 0 : i64, scratch_operands = 1 : i64, tpu.core_type = #tpu.core_type<tc>, window_params = [{transform_indices = @transform_0, window_bounds = array<i64: 8, 32>}, {transform_indices = @transform_1, window_bounds = array<i64: 1, 1>}]} {
    %c0_i32 = arith.constant 0 : i32
    %0 = arith.cmpi eq, %arg0, %c0_i32 : i32
    %1 = arith.extui %0 : i1 to i32
    %c0_i32_0 = arith.constant 0 : i32
    %2 = arith.cmpi ne, %1, %c0_i32_0 : i32
    scf.if %2 {
      %cst_11 = arith.constant 0.000000e+00 : f32
      %c0_12 = arith.constant 0 : index
      %39 = memref.load %arg3[%c0_12] : memref<1xf32, #tpu.memory_space<smem>>
      memref.store %cst_11, %arg3[%c0_12] : memref<1xf32, #tpu.memory_space<smem>>
    } else {
    }
    %c0 = arith.constant 0 : index
    %c0_1 = arith.constant 0 : index
    %3 = vector.load %arg1[%c0, %c0_1] : memref<8x32xf32, #tpu.memory_space<vmem>>, vector<8x32xf32>
    %cst = arith.constant dense<0xFF800000> : vector<8xf32>
    %4 = vector.multi_reduction <maximumf>, %3, %cst [1] : vector<8x32xf32> to vector<8xf32>
    %5 = vector.shape_cast %4 : vector<8xf32> to vector<8x1xf32>
    %6 = vector.broadcast %5 : vector<8x1xf32> to vector<8x32xf32>
    %7 = arith.subf %3, %6 : vector<8x32xf32>
    %8 = math.exp %7 : vector<8x32xf32>
    %cst_2 = arith.constant dense<0.000000e+00> : vector<8xf32>
    %9 = vector.multi_reduction <add>, %8, %cst_2 [1] : vector<8x32xf32> to vector<8xf32>
    %10 = vector.shape_cast %9 : vector<8xf32> to vector<8x1xf32>
    %11 = math.log %10 : vector<8x1xf32>
    %12 = vector.broadcast %11 : vector<8x1xf32> to vector<8x32xf32>
    %13 = arith.subf %7, %12 : vector<8x32xf32>
    %cst_3 = arith.constant -16.1180954 : f32
    %14 = vector.broadcast %cst_3 : f32 to vector<8x32xf32>
    %15 = arith.maximumf %13, %14 : vector<8x32xf32>
    %cst_4 = arith.constant 3.000000e-01 : f32
    %16 = vector.broadcast %cst_4 : f32 to vector<8x32xf32>
    %17 = arith.mulf %16, %15 : vector<8x32xf32>
    %18 = math.exp %17 : vector<8x32xf32>
    %cst_5 = arith.constant dense<0.000000e+00> : vector<8xf32>
    %19 = vector.multi_reduction <add>, %18, %cst_5 [1] : vector<8x32xf32> to vector<8xf32>
    %20 = vector.shape_cast %19 : vector<8xf32> to vector<8x1xf32>
    %c8_i32 = arith.constant 8 : i32
    %21 = arith.muli %arg0, %c8_i32 : i32
    %22 = tpu.iota {dimensions = array<i32: 0>} : vector<8x1xi32>
    %23 = vector.broadcast %21 : i32 to vector<8x1xi32>
    %24 = arith.addi %23, %22 : vector<8x1xi32>
    %c20_i32 = arith.constant 20 : i32
    %25 = vector.broadcast %c20_i32 : i32 to vector<8x1xi32>
    %26 = arith.cmpi slt, %24, %25 : vector<8x1xi32>
    %cst_6 = arith.constant 0.000000e+00 : f32
    %27 = vector.broadcast %cst_6 : f32 to vector<8x1xf32>
    %28 = arith.select %26, %20, %27 : vector<8x1xi1>, vector<8x1xf32>
    %c0_7 = arith.constant 0 : index
    %29 = memref.load %arg3[%c0_7] : memref<1xf32, #tpu.memory_space<smem>>
    %30 = vector.shape_cast %28 : vector<8x1xf32> to vector<1x8x1xf32>
    %cst_8 = arith.constant dense<0.000000e+00> : vector<1xf32>
    %31 = vector.multi_reduction <add>, %30, %cst_8 [1, 2] : vector<1x8x1xf32> to vector<1xf32>
    %32 = vector.shape_cast %31 : vector<1xf32> to vector<1x1x1xf32>
    %33 = vector.extract %32[0, 0, 0] : f32 from vector<1x1x1xf32>
    %34 = arith.addf %29, %33 : f32
    %c0_9 = arith.constant 0 : index
    %35 = memref.load %arg3[%c0_9] : memref<1xf32, #tpu.memory_space<smem>>
    memref.store %34, %arg3[%c0_9] : memref<1xf32, #tpu.memory_space<smem>>
    %c2_i32 = arith.constant 2 : i32
    %36 = arith.cmpi eq, %arg0, %c2_i32 : i32
    %37 = arith.extui %36 : i1 to i32
    %c0_i32_10 = arith.constant 0 : i32
    %38 = arith.cmpi ne, %37, %c0_i32_10 : i32
    scf.if %38 {
      %c0_11 = arith.constant 0 : index
      %39 = memref.load %arg3[%c0_11] : memref<1xf32, #tpu.memory_space<smem>>
      %cst_12 = arith.constant 2.000000e+01 : f32
      %40 = arith.divf %39, %cst_12 : f32
      %c0_13 = arith.constant 0 : index
      %c0_14 = arith.constant 0 : index
      %41 = memref.load %arg2[%c0_13, %c0_14] : memref<1x1xf32, #tpu.memory_space<smem>>
      memref.store %40, %arg2[%c0_13, %c0_14] : memref<1x1xf32, #tpu.memory_space<smem>>
    } else {
    }
    return
  }
  func.func @transform_0(%arg0: i32) -> (i32, i32) {
    %c0_i32 = arith.constant 0 : i32
    %c0_i32_0 = arith.constant 0 : i32
    return %arg0, %c0_i32 : i32, i32
  }
  func.func @transform_1(%arg0: i32) -> (i32, i32) {
    %c0_i32 = arith.constant 0 : i32
    %c0_i32_0 = arith.constant 0 : i32
    %c0_i32_1 = arith.constant 0 : i32
    return %c0_i32, %c0_i32_0 : i32, i32
  }
}

</mosaic_0001>

<llo_original>
// kernel: tpu_custom_call.1
$region0: #{tpu_custom_call.1}
  #allocation0 [shape = 'u32[]', space=smem, size = 0x4, offset = 0x4, fixed_abs, tag = 'smem constant byte address 0x4 - core index']
  #allocation1 [shape = 'u32[72,128]{1,0:T(1,128)}', space=vmem, size = 0x9000, scoped, tag = 'internal scratch']
  #allocation2 [shape = 'f32[1]{0:T(128)}', space=smem, size = 0x200, scoped, tag = 'scratch operand']
  %s0 = inlined_call_operand.hbm [shape: f32[20,32], index: 0, kind: input, shape index: {}]
  %s1 = inlined_call_operand.hbm [shape: f32[1,1], index: 1, kind: output, shape index: {}]
  %s2 = sld [smem:[#allocation0]]
  $region49: #{tpu_custom_call.1} parent=0
    _
  %s4 = ssub.s32 1, %s2
  %s5 = scalar_select 0, %s4, %s2
  $region1: #{tpu_custom_call.1} parent=0
    #allocation3 [shape = 'u8[8192]{0}', space=vmem, size = 0x2000, scoped, tag = 'input window, operand 0']
    #allocation4 [shape = 's32[2]{0}', space=sflag, size = 0x8, scoped, tag = 'scoped memory for tpu_custom_call.1']
    #allocation5 [shape = 's32[2]{0}', space=sflag, size = 0x8, scoped, tag = 'scoped memory for tpu_custom_call.1']
    #allocation6 [shape = 'u8[512]{0}', space=smem, size = 0x200, scoped, tag = 'output window, operand 0, single buffered']
    %6 = vsyncpa [#allocation4], 0
    %s7 = scalar_lea.sflag [#allocation4], 1
    %8 = vsyncpa %s7, 0
    %9 = vsyncpa [#allocation5], 0
    loop: start=0, step=1, limit=5
    $region2: #{tpu_custom_call.1} parent=1 // loop_pre_header
      _
    $region3: #{tpu_custom_call.1} parent=1 // loop_header
      %s11 = sphi 0, %s15
      %p12 = scmp.ge.s32.totalorder %s11, 5
      %s21 = sphi 0, %s23
      %s24 = sphi 0, %s21
      %s25 = sphi 0, %s24
      %s41 = sphi 0, %s25
      %s45 = sphi 0, %s45
      %s47 = sphi 0, %s45
      %s48 = sphi 0, %s47
      %s62 = sphi 0, %s48
    $region4: #{tpu_custom_call.1} parent=1 // loop_header_branch
      %14 = sbr.rel (%p12) target = $region8
    $region5: #{tpu_custom_call.1} parent=1 // loop_body
      %s16 = ssub.s32 %s11, 1
      %s17 = ssub.s32 %s11, 2
      %s18 = sadd.s32 %s11, 1
      %s19 = ssub.s32 %s11, %s18
      %p20 = scmp.eq.s32.totalorder %s19, 0
      %s22 = sadd.s32 %s21, 1
      %s23 = scalar_select %p20, %s21, %s22
      %p26 = pneg %p20
      %p27 = scmp.eq.s32.totalorder %s11, 2
      %p28 = por %p26, %p27
      %p29 = scmp.ne.s32.totalorder %s21, %s24
      %p30 = scmp.eq.s32.totalorder %s11, 0
      %p31 = por %p29, %p30
      %p32 = scmp.ne.s32.totalorder %s21, %s24
      %p33 = scmp.eq.s32.totalorder %s16, 2
      %p34 = por %p32, %p33
      %p35 = scmp.ne.s32.totalorder %s24, %s25
      %p36 = scmp.eq.s32.totalorder %s16, 0
      %p37 = por %p35, %p36
      %p38 = scmp.ne.s32.totalorder %s24, %s25
      %p39 = scmp.eq.s32.totalorder %s17, 2
      %p40 = por %p38, %p39
      %p42 = scmp.ne.s32.totalorder %s25, %s41
      %p43 = scmp.eq.s32.totalorder %s17, 0
      %p44 = por %p42, %p43
      %s46 = sadd.s32 %s45, 1
      %p49 = scmp.eq.s32.totalorder %s11, 2
      %p50 = scmp.ne.s32.totalorder %s45, %s47
      %p51 = scmp.eq.s32.totalorder %s11, 0
      %p52 = por %p50, %p51
      %p53 = scmp.ne.s32.totalorder %s45, %s47
      %p54 = scmp.eq.s32.totalorder %s16, 2
      %p55 = por %p53, %p54
      %p56 = scmp.ne.s32.totalorder %s47, %s48
      %p57 = scmp.eq.s32.totalorder %s16, 0
      %p58 = por %p56, %p57
      %p59 = scmp.ne.s32.totalorder %s47, %s48
      %p60 = scmp.eq.s32.totalorder %s17, 2
      %p61 = por %p59, %p60
      %p63 = scmp.ne.s32.totalorder %s48, %s62
      %p64 = scmp.eq.s32.totalorder %s17, 0
      %p65 = por %p63, %p64
      %p66 = scmp.le.s32.totalorder 1, %s11
      %p67 = scmp.lt.s32.totalorder %s11, 4
      %p68 = pnand %p66, %p67
      %p69 = pneg %p68
      // Predicated region
      $region9: #{tpu_custom_call.1} parent=5 // pred_check
        _
      $region10: #{tpu_custom_call.1} parent=5 // pred_check_branch
        %71 = sbr.rel (%p68) target = $region12
      $region11: #{tpu_custom_call.1} parent=5 // pred_region
        %s72 = ssub.s32 %s11, 1
      $region12: #{tpu_custom_call.1} parent=5 // pred_fallthru
        _
      %p73 = scmp.lt.s32.totalorder %s11, 3
      // Predicated region
      $region13: #{tpu_custom_call.1} parent=5 // pred_check
        %p74 = pneg %p73
      $region14: #{tpu_custom_call.1} parent=5 // pred_check_branch
        %76 = sbr.rel (%p74) target = $region16
      $region15: #{tpu_custom_call.1} parent=5 // pred_region
        // Predicated region
        $region17: #{tpu_custom_call.1} parent=15 // pred_check
          %p77 = pneg %p31
        $region18: #{tpu_custom_call.1} parent=15 // pred_check_branch
          %79 = sbr.rel (%p77) target = $region20
        $region19: #{tpu_custom_call.1} parent=15 // pred_region
          %s80 = sand.u32 %s21, 1
          %s81 = scalar_lea.sflag [#allocation4], %s80
          %s82 = sand.u32 %s21, 1
          %s83 = smul.addr %s82, 8
          %s84 = scalar_lea.vmem [#allocation3], %s83
          %86 = vsyncadd %s81, 0
          %s87 = smul.addr %s11, 8
          %s88 = scalar_lea.hbm %s0, %s87
          %s90 = sshll.u32 %s88, 4
          %s91 = int_to_ptr.hbm [resolvable:$true] %s90
          %s92 = sshll.u32 %s84, 4
          %s93 = int_to_ptr.vmem [resolvable:$true] %s92
          %95 = dma.hbm_to_vmem [thread:$0]  %s91, 128, %s93, %s81
        $region20: #{tpu_custom_call.1} parent=15 // pred_fallthru
          _
      $region16: #{tpu_custom_call.1} parent=5 // pred_fallthru
        _
      %p96 = scmp.le.s32.totalorder 1, %s11
      %p97 = scmp.lt.s32.totalorder %s11, 4
      %p98 = pnand %p96, %p97
      %p99 = pneg %p98
      // Predicated region
      $region21: #{tpu_custom_call.1} parent=5 // pred_check
        _
      $region22: #{tpu_custom_call.1} parent=5 // pred_check_branch
        %101 = sbr.rel (%p98) target = $region24
      $region23: #{tpu_custom_call.1} parent=5 // pred_region
        %s102 = ssub.s32 %s11, 1
        %s103 = sand.u32 %s24, 1
        %s104 = scalar_lea.sflag [#allocation4], %s103
        %s105 = sand.u32 %s24, 1
        %s106 = smul.addr %s105, 8
        %s107 = scalar_lea.vmem [#allocation3], %s106
        // Predicated region
        $region25: #{tpu_custom_call.1} parent=23 // pred_check
          %p108 = pneg %p37
        $region26: #{tpu_custom_call.1} parent=23 // pred_check_branch
          %110 = sbr.rel (%p108) target = $region28
        $region27: #{tpu_custom_call.1} parent=23 // pred_region
          %112 = dma.done %s104, 128
        $region28: #{tpu_custom_call.1} parent=23 // pred_fallthru
          _
        %s113 = sand.u32 %s24, 1
        %s114 = scalar_lea.sflag [#allocation4], %s113
        %s115 = sand.u32 %s24, 1
        %s116 = smul.addr %s115, 8
        %s117 = scalar_lea.vmem [#allocation3], %s116
        %p118 = pneg %p37
        %p119 = pneg %p34
        %p120 = pneg %p58
        %p121 = pneg %p55
        %p122 = scmp.eq.s32.totalorder %s16, 0
        // Predicated region
        $region29: #{tpu_custom_call.1} parent=23 // pred_check
          %p123 = pneg %p122
        $region30: #{tpu_custom_call.1} parent=23 // pred_check_branch
          %125 = sbr.rel (%p123) target = $region32
        $region31: #{tpu_custom_call.1} parent=23 // pred_region
          %s126 = scalar_lea.smem [#allocation2], 0
          %127 = sst [smem:[%s126]] 0.0
        $region32: #{tpu_custom_call.1} parent=23 // pred_fallthru
          _
        %v128 = vld [vmem:[%s107] sm:$0xff]
        %vm129 = vcmask 261120
        %v130 = vsel %vm129, %v128, -inf
        %131 = vmax.xlane.f32.xlu0 %v130
        %v132 = vpop.xlane.xlu0 %131
        %v133 = vsub.f32 %v128, %v132
        %v134 = vmul.f32 %v133, 1.442695
        %v135 = vpow.pop %v134
        %v136 = vsel %vm129, %v135, 0.0
        %137 = vadd.xlane.f32.xlu0 %v136
        %v138 = vpop.xlane.xlu0 %137
        %v139 = vlog2.pop %v138
        %v140 = vmul.f32 %v139, 0.6931472
        %v141 = vsub.f32 %v133, %v140
        %v142 = vmax.f32 %v141, -16.118095
        %v143 = vmul.f32 %v142, 0.3
        %v144 = vmul.f32 %v143, 1.442695
        %v145 = vpow.pop %v144
        %v146 = vsel %vm129, %v145, 0.0
        %147 = vadd.xlane.f32.xlu0 %v146
        %v148 = vpop.xlane.xlu0 %147
        %s149 = smul.u32 %s16, 8
        %v150 = vlaneseq
        %v151 = vshrl.u32 %v150, 7
        %v152 = vstv %s149
        %v153 = vadd.s32 %v152, %v151
        %vm154 = vcmp.lt.s32.totalorder %v153, 20
        %v155 = vsel %vm154, %v148, 0.0
        %s156 = sld [smem:[#allocation2]]
        %vm157 = vcmask 7168
        %v158 = vsel %vm157, %v155, 0.0
        %159 = vadd.xlane.f32.xlu0 %v158
        %v160 = vpop.xlane.xlu0 %159
        %v161 = vrot.slane %v160, 4
        %v162 = vadd.f32 %v160, %v161
        %v163 = vrot.slane %v162, 2
        %v164 = vadd.f32 %v162, %v163
        %v165 = vrot.slane %v164, 1
        %v166 = vadd.f32 %v164, %v165
        %s167 = vtos %v166
        %s168 = sadd.f32 %s156, %s167
        %s169 = scalar_lea.smem [#allocation2], 0
        %170 = sst [smem:[%s169]] %s168
        %p171 = scmp.eq.s32.totalorder %s16, 2
        // Predicated region
        $region33: #{tpu_custom_call.1} parent=23 // pred_check
          %p172 = pneg %p171
        $region34: #{tpu_custom_call.1} parent=23 // pred_check_branch
          %174 = sbr.rel (%p172) target = $region36
        $region35: #{tpu_custom_call.1} parent=23 // pred_region
          %s175 = sld [smem:[#allocation2]]
          %v176 = vrcp.pop 20.0
          %v177 = vmul.f32 20.0, %v176
          %v178 = vsub.f32 1.0, %v177
          %v179 = vmul.f32 %v176, %v178
          %v180 = vadd.f32 %v176, %v179
          %vm181 = vweird.f32 %v176
          %v182 = vsel %vm181, %v176, %v180
          %s183 = vtos %v182
          %s184 = smul.f32 %s175, %s183
          %s185 = scalar_lea.smem [#allocation6], 0
          %186 = sst [smem:[%s185]] %s184
        $region36: #{tpu_custom_call.1} parent=23 // pred_fallthru
          _
        // Predicated region
        $region37: #{tpu_custom_call.1} parent=23 // pred_check
          %p187 = pneg %p55
        $region38: #{tpu_custom_call.1} parent=23 // pred_check_branch
          %189 = sbr.rel (%p187) target = $region40
        $region39: #{tpu_custom_call.1} parent=23 // pred_region
          %191 = vsyncadd [#allocation5], 0
          %s193 = sshll.u32 %s1, 4
          %s194 = int_to_ptr.hbm [resolvable:$true] %s193
          %196 = dma.smem_to_hbm [#allocation6], 16, %s194, [#allocation5]
        $region40: #{tpu_custom_call.1} parent=23 // pred_fallthru
          _
        // Predicated region
        $region41: #{tpu_custom_call.1} parent=23 // pred_check
          %p197 = pneg %p55
        $region42: #{tpu_custom_call.1} parent=23 // pred_check_branch
          %199 = sbr.rel (%p197) target = $region44
        $region43: #{tpu_custom_call.1} parent=23 // pred_region
          %201 = dma.done [#allocation5], 16
        $region44: #{tpu_custom_call.1} parent=23 // pred_fallthru
          _
        %202 = sfence
      $region24: #{tpu_custom_call.1} parent=5 // pred_fallthru
        _
      %p203 = scmp.le.s32.totalorder 2, %s11
      // Predicated region
      $region45: #{tpu_custom_call.1} parent=5 // pred_check
        %p204 = pneg %p203
      $region46: #{tpu_custom_call.1} parent=5 // pred_check_branch
        %206 = sbr.rel (%p204) target = $region48
      $region47: #{tpu_custom_call.1} parent=5 // pred_region
        %s207 = ssub.s32 %s11, 2
      $region48: #{tpu_custom_call.1} parent=5 // pred_fallthru
        _
    $region6: #{tpu_custom_call.1} parent=1 // loop_footer
      %s15 = sadd.s32 1, %s11
    $region7: #{tpu_custom_call.1} parent=1 // loop_footer_branch
      %10 = sbr.rel target = $region3
    $region8: #{tpu_custom_call.1} parent=1 // loop_exit
      _
    %208 = vsyncpa [#allocation4], 1
    %s209 = scalar_lea.sflag [#allocation4], 1
    %210 = vsyncpa %s209, 1
    %211 = vsyncpa [#allocation5], 1
    %s212 = scalar_lea.sflag [#allocation5], 1
    %213 = vsyncpa %s212, 1

</llo_original>
